<compile_context>
chip_gen: v7x
topology: tpu7x:2x2x1
jax: 0.10.0
libtpu: 0.0.40
codegen_flags: <defaults>
</compile_context>

<pallas_src>
import numpy as np
import jax
import jax.numpy as jnp
from jax.experimental import pallas as pl
from jax.experimental.pallas import tpu as pltpu

# ---------------------------------------------------------------------------
# sizes (small stand-ins for the original 600x600 / 256 crop configuration)
# ---------------------------------------------------------------------------
B = 2               # batch
IMG = 32            # detector input image spatial size
IMG_D = 32          # images_d spatial size (stand-in for 256 source)
CROP = 32           # crop resize target (stand-in for 256)
SCALE = 64.0        # self.scale (stand-in for 600)
P = 8               # patch size (backbone stride)
GRID = IMG // P     # 4
R = GRID * GRID     # 16 ROIs per image (fixed grid replaces RPN proposals)
BR = B * R          # 32 rows: batch flattened into the sublane axis
D = 64              # hidden feature dim
C = 8               # number of classes (incl. background class 0)
KIN = 3 * P * P     # 192
HEAD_W = 5 * C      # fused head output: C class logits + 4*C planar deltas = 40
OUT_W = 128         # lane-dense output slab width

# cfg.TRAIN.BBOX_NORMALIZE_STDS / BBOX_NORMALIZE_MEANS
BBOX_STDS = (0.1, 0.1, 0.2, 0.2)
BBOX_MEANS = (0.0, 0.0, 0.0, 0.0)
DELTA_CLIP = float(np.log(1000.0 / 16.0))   # faster-rcnn dw/dh clamp


# ---------------------------------------------------------------------------
# Fused kernel: backbone patch-embed conv + cls/bbox head + bbox decode
#
# output slab columns (lane-dense, one unmasked 128-wide store):
#   [0:C)    softmax class scores
#   [C:2C)   decoded x1    [2C:3C) y1    [3C:4C) x2    [4C:5C) y2
#   [5C:128) zero padding
# ---------------------------------------------------------------------------
def _detector_kernel(x_ref, wp_ref, bp_ref, wh_ref, bh_ref, roi_ref, out_ref):
    # backbone "conv" (stride-P patch embed) + ReLU  -- bf16 in, f32 accumulate
    feat = jnp.maximum(
        jnp.dot(x_ref[...], wp_ref[...], preferred_element_type=jnp.float32)
        + bp_ref[...],
        0.0,
    )                                                          # (BR, D) f32

    # fused cls + bbox head: one MXU matmul, split with static lane slices
    h = (jnp.dot(feat.astype(jnp.bfloat16), wh_ref[...],
                 preferred_element_type=jnp.float32)
         + bh_ref[...])                                        # (BR, 5C) f32

    # softmax over class logits
    logits = h[:, 0:C]
    m = jnp.max(logits, axis=-1, keepdims=True)
    e = jnp.exp(logits - m)
    scores = e * pl.reciprocal(jnp.sum(e, axis=-1, keepdims=True), approx=True)

    # bbox decode: un-normalize deltas, bbox_transform_inv, clip_boxes
    bx = roi_ref[...]                                          # (BR, 4) rois
    w = bx[:, 2:3] - bx[:, 0:1] + 1.0
    hgt = bx[:, 3:4] - bx[:, 1:2] + 1.0
    cx = bx[:, 0:1] + 0.5 * w
    cy = bx[:, 1:2] + 0.5 * hgt
    # deltas are laid out planar: [dx(C) | dy(C) | dw(C) | dh(C)]
    dx = h[:, C:2 * C] * BBOX_STDS[0] + BBOX_MEANS[0]
    dy = h[:, 2 * C:3 * C] * BBOX_STDS[1] + BBOX_MEANS[1]
    dw = jnp.minimum(h[:, 3 * C:4 * C] * BBOX_STDS[2] + BBOX_MEANS[2], DELTA_CLIP)
    dh = jnp.minimum(h[:, 4 * C:5 * C] * BBOX_STDS[3] + BBOX_MEANS[3], DELTA_CLIP)
    pcx = dx * w + cx
    pcy = dy * hgt + cy
    pw = jnp.exp(dw) * w
    ph = jnp.exp(dh) * hgt
    hi = SCALE - 1.0                       # clip_boxes to [0, scale-1]
    x1 = jnp.clip(pcx - 0.5 * pw, 0.0, hi)
    y1 = jnp.clip(pcy - 0.5 * ph, 0.0, hi)
    x2 = jnp.clip(pcx + 0.5 * pw, 0.0, hi)
    y2 = jnp.clip(pcy + 0.5 * ph, 0.0, hi)

    pad = jnp.zeros((BR, OUT_W - HEAD_W), jnp.float32)
    out_ref[...] = jnp.concatenate([scores, x1, y1, x2, y2, pad], axis=-1)


def fused_detect(patches, wp, bp, wh, bh, rois):
    return pl.pallas_call(
        _detector_kernel,
        out_shape=jax.ShapeDtypeStruct((BR, OUT_W), jnp.float32),
        grid=(1,),
        in_specs=[
            pl.BlockSpec((BR, KIN), lambda i: (0, 0)),
            pl.BlockSpec((KIN, D), lambda i: (0, 0)),
            pl.BlockSpec((1, D), lambda i: (0, 0)),
            pl.BlockSpec((D, HEAD_W), lambda i: (0, 0)),
            pl.BlockSpec((1, HEAD_W), lambda i: (0, 0)),
            pl.BlockSpec((BR, 4), lambda i: (0, 0)),
        ],
        out_specs=pl.BlockSpec((BR, OUT_W), lambda i: (0, 0)),
        compiler_params=pltpu.CompilerParams(dimension_semantics=("arbitrary",)),
    )(patches, wp, bp, wh, bh, rois)


# ---------------------------------------------------------------------------
# batched on-device crop + nearest resize (replaces the host per-box loop)
# ---------------------------------------------------------------------------
def _crop_resize_one(img, box):
    # NOTE: matches the reference module, which uses box[0] as the row ('upper')
    # and box[1] as the column ('left') offset of an [x1,y1,x2,y2] box.
    upper = jnp.maximum(0, (box[0] / SCALE * IMG_D).astype(jnp.int32))
    left = jnp.maximum(0, (box[1] / SCALE * IMG_D).astype(jnp.int32))
    bottom = jnp.minimum(IMG_D, (box[2] / SCALE * IMG_D).astype(jnp.int32))
    right = jnp.minimum(IMG_D, (box[3] / SCALE * IMG_D).astype(jnp.int32))
    bottom = jnp.maximum(bottom, upper + 1)       # guard degenerate boxes
    right = jnp.maximum(right, left + 1)
    r = jnp.arange(CROP, dtype=jnp.int32)
    rows = jnp.clip(upper + (r * (bottom - upper)) // CROP, 0, IMG_D - 1)
    cols = jnp.clip(left + (r * (right - left)) // CROP, 0, IMG_D - 1)
    return img[:, rows[:, None], cols[None, :]]   # (3, CROP, CROP) nearest


_crop_resize_batched = jax.vmap(
    jax.vmap(_crop_resize_one, in_axes=(None, 0)), in_axes=(0, 0))


# ---------------------------------------------------------------------------
# forward (all on device, single jit)
# ---------------------------------------------------------------------------
@jax.jit
def detect_core(images, images_d, params):
    # glue: extract stride-P patches, flatten batch into rows, cast to bf16
    x = images.reshape(B, 3, GRID, P, GRID, P)
    x = x.transpose(0, 2, 4, 1, 3, 5).reshape(BR, KIN).astype(jnp.bfloat16)

    # TODO(synk): the real RPN produces data-dependent proposals from a loaded
    # resnet101 checkpoint; replaced by a fixed grid of ROIs in "scale" coords.
    gy, gx = jnp.meshgrid(jnp.arange(GRID, dtype=jnp.float32),
                          jnp.arange(GRID, dtype=jnp.float32), indexing="ij")
    cell = SCALE / GRID
    rois = jnp.stack([gx.reshape(-1) * cell,
                      gy.reshape(-1) * cell,
                      (gx.reshape(-1) + 1.0) * cell - 1.0,
                      (gy.reshape(-1) + 1.0) * cell - 1.0], axis=-1)   # (R, 4)
    rois = jnp.tile(rois, (B, 1))                                      # (BR, 4)

    # fuse cls + bbox head weights into one matmul (bf16 in / f32 acc)
    wp = params["w_patch"].astype(jnp.bfloat16)
    wh = jnp.concatenate([params["w_cls"], params["w_bbox"]],
                         axis=1).astype(jnp.bfloat16)                  # (D, 5C)
    bh = jnp.concatenate([params["b_cls"], params["b_bbox"]], axis=1)  # (1, 5C)

    slab = fused_detect(x, wp, params["b_patch"], wh, bh, rois)        # (BR, 128)
    slab = slab.reshape(B, R, OUT_W)
    scores = slab[..., 0:C]                                            # (B, R, C)
    pb = jnp.stack([slab[..., C:2 * C], slab[..., 2 * C:3 * C],
                    slab[..., 3 * C:4 * C], slab[..., 4 * C:5 * C]],
                   axis=-1)                                            # (B, R, C, 4)
    pred_boxes = pb.reshape(B, R, 4 * C)

    # TODO(synk): score>thresh filtering, torch.sort and NMS produce dynamic
    # shapes; kept static by selecting the argmax-score ROI per foreground
    # class. whole-image box is prepended and appended as in the original.
    best = jnp.argmax(scores[:, :, 1:], axis=1)                        # (B, C-1)
    cls_boxes = jnp.take_along_axis(pb[:, :, 1:, :],
                                    best[:, None, :, None], axis=1)[:, 0]
    whole = jnp.broadcast_to(
        jnp.array([[0.0, 0.0, SCALE, SCALE]], jnp.float32)[None], (B, 1, 4))
    target_bbox = jnp.concatenate([whole, cls_boxes, whole], axis=1)   # (B, C+1, 4)

    # batched per-box crop + nearest resize (F.interpolate equivalent), on device
    cropped = _crop_resize_batched(images_d, target_bbox)              # (B, C+1, 3, CROP, CROP)
    cropped_imgs = cropped.reshape(B * (C + 1), 3, CROP, CROP)
    return cropped_imgs, pred_boxes, scores, target_bbox


def detector_forward(images, images_d, params):
    cropped_imgs, _pred_boxes, _scores, target_bbox = detect_core(
        images, images_d, params)
    bbox_num = np.full(B, C + 1, dtype=np.int64)
    return cropped_imgs, bbox_num, target_bbox


# ---------------------------------------------------------------------------
if __name__ == "__main__":
    key = jax.random.PRNGKey(0)
    ks = jax.random.split(key, 5)
    # deterministic synthetic parameters (checkpoint load not reproduced)
    # NOTE: w_bbox uses a planar delta layout [dx(C)|dy(C)|dw(C)|dh(C)] (synthetic
    # weights, so the lane-friendly layout is chosen); the wrapper restores the
    # standard per-class [x1,y1,x2,y2] pred_boxes layout.
    params = {
        "w_patch": 0.05 * jax.random.normal(ks[0], (KIN, D), jnp.float32),
        "b_patch": jnp.zeros((1, D), jnp.float32),
        "w_cls": 0.05 * jax.random.normal(ks[1], (D, C), jnp.float32),
        "b_cls": jnp.zeros((1, C), jnp.float32),
        "w_bbox": 0.05 * jax.random.normal(ks[2], (D, 4 * C), jnp.float32),
        "b_bbox": jnp.zeros((1, 4 * C), jnp.float32),
    }
    images = jax.random.normal(ks[3], (B, 3, IMG, IMG), jnp.float32)
    images_d = jax.random.uniform(ks[4], (B, 3, IMG_D, IMG_D), jnp.float32)

    cropped_imgs, bbox_num, target_bbox = detector_forward(images, images_d, params)
    jax.block_until_ready(cropped_imgs)
    assert cropped_imgs.shape == (int(bbox_num.sum()), 3, CROP, CROP)
    assert target_bbox.shape == (B, C + 1, 4)
    assert bool(jnp.all(jnp.isfinite(cropped_imgs)))
    assert bool(jnp.all(jnp.isfinite(target_bbox)))
    print("KERNEL_OK")
</pallas_src>

<mosaic_0001>
module attributes {stable_mosaic.version = 11 : i64} {
  func.func @_detector_kernel(%arg0: i32, %arg1: memref<32x192xbf16, #tpu.memory_space<vmem>>, %arg2: memref<192x64xbf16, #tpu.memory_space<vmem>>, %arg3: memref<1x64xf32, #tpu.memory_space<vmem>>, %arg4: memref<64x40xbf16, #tpu.memory_space<vmem>>, %arg5: memref<1x40xf32, #tpu.memory_space<vmem>>, %arg6: memref<32x4xf32, #tpu.memory_space<vmem>>, %arg7: memref<32x128xf32, #tpu.memory_space<vmem>>) attributes {dimension_semantics = [#tpu.dimension_semantics<arbitrary>], iteration_bounds = array<i64: 1>, scalar_prefetch = 0 : i64, scratch_operands = 0 : i64, tpu.core_type = #tpu.core_type<tc>, window_params = [{pipeline_mode = #tpu.pipeline_mode<synchronous>, transform_indices = @transform_0, window_bounds = array<i64: 32, 192>}, {pipeline_mode = #tpu.pipeline_mode<synchronous>, transform_indices = @transform_1, window_bounds = array<i64: 192, 64>}, {pipeline_mode = #tpu.pipeline_mode<synchronous>, transform_indices = @transform_2, window_bounds = array<i64: 1, 64>}, {pipeline_mode = #tpu.pipeline_mode<synchronous>, transform_indices = @transform_3, window_bounds = array<i64: 64, 40>}, {pipeline_mode = #tpu.pipeline_mode<synchronous>, transform_indices = @transform_4, window_bounds = array<i64: 1, 40>}, {pipeline_mode = #tpu.pipeline_mode<synchronous>, transform_indices = @transform_5, window_bounds = array<i64: 32, 4>}, {pipeline_mode = #tpu.pipeline_mode<synchronous>, transform_indices = @transform_6, window_bounds = array<i64: 32, 128>}]} {
    %c0 = arith.constant 0 : index
    %c0_0 = arith.constant 0 : index
    %0 = vector.load %arg1[%c0, %c0_0] : memref<32x192xbf16, #tpu.memory_space<vmem>>, vector<32x192xbf16>
    %c0_1 = arith.constant 0 : index
    %c0_2 = arith.constant 0 : index
    %1 = vector.load %arg2[%c0_1, %c0_2] : memref<192x64xbf16, #tpu.memory_space<vmem>>, vector<192x64xbf16>
    %cst = arith.constant dense<0.000000e+00> : vector<32x64xf32>
    %2 = tpu.matmul %0, %1, %cst {dimension_numbers = #tpu.dot_dimension_numbers<[1], [0], [0], [1], [0, 0, 1, 1], [], []>} : vector<32x192xbf16>, vector<192x64xbf16>, vector<32x64xf32> -> vector<32x64xf32>
    %c0_3 = arith.constant 0 : index
    %c0_4 = arith.constant 0 : index
    %3 = vector.load %arg3[%c0_3, %c0_4] : memref<1x64xf32, #tpu.memory_space<vmem>>, vector<1x64xf32>
    %4 = vector.broadcast %3 : vector<1x64xf32> to vector<32x64xf32>
    %5 = arith.addf %2, %4 : vector<32x64xf32>
    %cst_5 = arith.constant 0.000000e+00 : f32
    %6 = vector.broadcast %cst_5 : f32 to vector<32x64xf32>
    %7 = arith.maximumf %5, %6 : vector<32x64xf32>
    %8 = arith.truncf %7 : vector<32x64xf32> to vector<32x64xbf16>
    %c0_6 = arith.constant 0 : index
    %c0_7 = arith.constant 0 : index
    %9 = vector.load %arg4[%c0_6, %c0_7] : memref<64x40xbf16, #tpu.memory_space<vmem>>, vector<64x40xbf16>
    %cst_8 = arith.constant dense<0.000000e+00> : vector<32x40xf32>
    %10 = tpu.matmul %8, %9, %cst_8 {dimension_numbers = #tpu.dot_dimension_numbers<[1], [0], [0], [1], [0, 0, 1, 1], [], []>} : vector<32x64xbf16>, vector<64x40xbf16>, vector<32x40xf32> -> vector<32x40xf32>
    %c0_9 = arith.constant 0 : index
    %c0_10 = arith.constant 0 : index
    %11 = vector.load %arg5[%c0_9, %c0_10] : memref<1x40xf32, #tpu.memory_space<vmem>>, vector<1x40xf32>
    %12 = vector.broadcast %11 : vector<1x40xf32> to vector<32x40xf32>
    %13 = arith.addf %10, %12 : vector<32x40xf32>
    %14 = vector.extract_strided_slice %13 {offsets = [0, 0], sizes = [32, 8], strides = [1, 1]} : vector<32x40xf32> to vector<32x8xf32>
    %cst_11 = arith.constant dense<0xFF800000> : vector<32xf32>
    %15 = vector.multi_reduction <maximumf>, %14, %cst_11 [1] : vector<32x8xf32> to vector<32xf32>
    %16 = vector.shape_cast %15 : vector<32xf32> to vector<32x1xf32>
    %17 = vector.broadcast %16 : vector<32x1xf32> to vector<32x8xf32>
    %18 = arith.subf %14, %17 : vector<32x8xf32>
    %19 = math.exp %18 : vector<32x8xf32>
    %cst_12 = arith.constant dense<0.000000e+00> : vector<32xf32>
    %20 = vector.multi_reduction <add>, %19, %cst_12 [1] : vector<32x8xf32> to vector<32xf32>
    %21 = vector.shape_cast %20 : vector<32xf32> to vector<32x1xf32>
    %22 = tpu.reciprocal %21 {approx = true} : vector<32x1xf32> -> vector<32x1xf32>
    %23 = vector.broadcast %22 : vector<32x1xf32> to vector<32x8xf32>
    %24 = arith.mulf %19, %23 : vector<32x8xf32>
    %c0_13 = arith.constant 0 : index
    %c0_14 = arith.constant 0 : index
    %25 = vector.load %arg6[%c0_13, %c0_14] : memref<32x4xf32, #tpu.memory_space<vmem>>, vector<32x4xf32>
    %26 = vector.extract_strided_slice %25 {offsets = [0, 2], sizes = [32, 1], strides = [1, 1]} : vector<32x4xf32> to vector<32x1xf32>
    %27 = vector.extract_strided_slice %25 {offsets = [0, 0], sizes = [32, 1], strides = [1, 1]} : vector<32x4xf32> to vector<32x1xf32>
    %28 = arith.subf %26, %27 : vector<32x1xf32>
    %cst_15 = arith.constant 1.000000e+00 : f32
    %29 = vector.broadcast %cst_15 : f32 to vector<32x1xf32>
    %30 = arith.addf %28, %29 : vector<32x1xf32>
    %31 = vector.extract_strided_slice %25 {offsets = [0, 3], sizes = [32, 1], strides = [1, 1]} : vector<32x4xf32> to vector<32x1xf32>
    %32 = vector.extract_strided_slice %25 {offsets = [0, 1], sizes = [32, 1], strides = [1, 1]} : vector<32x4xf32> to vector<32x1xf32>
    %33 = arith.subf %31, %32 : vector<32x1xf32>
    %cst_16 = arith.constant 1.000000e+00 : f32
    %34 = vector.broadcast %cst_16 : f32 to vector<32x1xf32>
    %35 = arith.addf %33, %34 : vector<32x1xf32>
    %36 = vector.extract_strided_slice %25 {offsets = [0, 0], sizes = [32, 1], strides = [1, 1]} : vector<32x4xf32> to vector<32x1xf32>
    %cst_17 = arith.constant 5.000000e-01 : f32
    %37 = vector.broadcast %cst_17 : f32 to vector<32x1xf32>
    %38 = arith.mulf %37, %30 : vector<32x1xf32>
    %39 = arith.addf %36, %38 : vector<32x1xf32>
    %40 = vector.extract_strided_slice %25 {offsets = [0, 1], sizes = [32, 1], strides = [1, 1]} : vector<32x4xf32> to vector<32x1xf32>
    %cst_18 = arith.constant 5.000000e-01 : f32
    %41 = vector.broadcast %cst_18 : f32 to vector<32x1xf32>
    %42 = arith.mulf %41, %35 : vector<32x1xf32>
    %43 = arith.addf %40, %42 : vector<32x1xf32>
    %44 = vector.extract_strided_slice %13 {offsets = [0, 8], sizes = [32, 8], strides = [1, 1]} : vector<32x40xf32> to vector<32x8xf32>
    %cst_19 = arith.constant 1.000000e-01 : f32
    %45 = vector.broadcast %cst_19 : f32 to vector<32x8xf32>
    %46 = arith.mulf %44, %45 : vector<32x8xf32>
    %cst_20 = arith.constant 0.000000e+00 : f32
    %47 = vector.broadcast %cst_20 : f32 to vector<32x8xf32>
    %48 = arith.addf %46, %47 : vector<32x8xf32>
    %49 = vector.extract_strided_slice %13 {offsets = [0, 16], sizes = [32, 8], strides = [1, 1]} : vector<32x40xf32> to vector<32x8xf32>
    %cst_21 = arith.constant 1.000000e-01 : f32
    %50 = vector.broadcast %cst_21 : f32 to vector<32x8xf32>
    %51 = arith.mulf %49, %50 : vector<32x8xf32>
    %cst_22 = arith.constant 0.000000e+00 : f32
    %52 = vector.broadcast %cst_22 : f32 to vector<32x8xf32>
    %53 = arith.addf %51, %52 : vector<32x8xf32>
    %54 = vector.extract_strided_slice %13 {offsets = [0, 24], sizes = [32, 8], strides = [1, 1]} : vector<32x40xf32> to vector<32x8xf32>
    %cst_23 = arith.constant 2.000000e-01 : f32
    %55 = vector.broadcast %cst_23 : f32 to vector<32x8xf32>
    %56 = arith.mulf %54, %55 : vector<32x8xf32>
    %cst_24 = arith.constant 0.000000e+00 : f32
    %57 = vector.broadcast %cst_24 : f32 to vector<32x8xf32>
    %58 = arith.addf %56, %57 : vector<32x8xf32>
    %cst_25 = arith.constant 4.13516665 : f32
    %59 = vector.broadcast %cst_25 : f32 to vector<32x8xf32>
    %60 = arith.minimumf %58, %59 : vector<32x8xf32>
    %61 = vector.extract_strided_slice %13 {offsets = [0, 32], sizes = [32, 8], strides = [1, 1]} : vector<32x40xf32> to vector<32x8xf32>
    %cst_26 = arith.constant 2.000000e-01 : f32
    %62 = vector.broadcast %cst_26 : f32 to vector<32x8xf32>
    %63 = arith.mulf %61, %62 : vector<32x8xf32>
    %cst_27 = arith.constant 0.000000e+00 : f32
    %64 = vector.broadcast %cst_27 : f32 to vector<32x8xf32>
    %65 = arith.addf %63, %64 : vector<32x8xf32>
    %cst_28 = arith.constant 4.13516665 : f32
    %66 = vector.broadcast %cst_28 : f32 to vector<32x8xf32>
    %67 = arith.minimumf %65, %66 : vector<32x8xf32>
    %68 = vector.broadcast %30 : vector<32x1xf32> to vector<32x8xf32>
    %69 = arith.mulf %48, %68 : vector<32x8xf32>
    %70 = vector.broadcast %39 : vector<32x1xf32> to vector<32x8xf32>
    %71 = arith.addf %69, %70 : vector<32x8xf32>
    %72 = vector.broadcast %35 : vector<32x1xf32> to vector<32x8xf32>
    %73 = arith.mulf %53, %72 : vector<32x8xf32>
    %74 = vector.broadcast %43 : vector<32x1xf32> to vector<32x8xf32>
    %75 = arith.addf %73, %74 : vector<32x8xf32>
    %76 = math.exp %60 : vector<32x8xf32>
    %77 = vector.broadcast %30 : vector<32x1xf32> to vector<32x8xf32>
    %78 = arith.mulf %76, %77 : vector<32x8xf32>
    %79 = math.exp %67 : vector<32x8xf32>
    %80 = vector.broadcast %35 : vector<32x1xf32> to vector<32x8xf32>
    %81 = arith.mulf %79, %80 : vector<32x8xf32>
    %cst_29 = arith.constant 5.000000e-01 : f32
    %82 = vector.broadcast %cst_29 : f32 to vector<32x8xf32>
    %83 = arith.mulf %82, %78 : vector<32x8xf32>
    %84 = arith.subf %71, %83 : vector<32x8xf32>
    %cst_30 = arith.constant 0.000000e+00 : f32
    %cst_31 = arith.constant 6.300000e+01 : f32
    %85 = vector.broadcast %cst_30 : f32 to vector<32x8xf32>
    %86 = arith.maximumf %85, %84 : vector<32x8xf32>
    %87 = vector.broadcast %cst_31 : f32 to vector<32x8xf32>
    %88 = arith.minimumf %87, %86 : vector<32x8xf32>
    %cst_32 = arith.constant 5.000000e-01 : f32
    %89 = vector.broadcast %cst_32 : f32 to vector<32x8xf32>
    %90 = arith.mulf %89, %81 : vector<32x8xf32>
    %91 = arith.subf %75, %90 : vector<32x8xf32>
    %cst_33 = arith.constant 0.000000e+00 : f32
    %cst_34 = arith.constant 6.300000e+01 : f32
    %92 = vector.broadcast %cst_33 : f32 to vector<32x8xf32>
    %93 = arith.maximumf %92, %91 : vector<32x8xf32>
    %94 = vector.broadcast %cst_34 : f32 to vector<32x8xf32>
    %95 = arith.minimumf %94, %93 : vector<32x8xf32>
    %cst_35 = arith.constant 5.000000e-01 : f32
    %96 = vector.broadcast %cst_35 : f32 to vector<32x8xf32>
    %97 = arith.mulf %96, %78 : vector<32x8xf32>
    %98 = arith.addf %71, %97 : vector<32x8xf32>
    %cst_36 = arith.constant 0.000000e+00 : f32
    %cst_37 = arith.constant 6.300000e+01 : f32
    %99 = vector.broadcast %cst_36 : f32 to vector<32x8xf32>
    %100 = arith.maximumf %99, %98 : vector<32x8xf32>
    %101 = vector.broadcast %cst_37 : f32 to vector<32x8xf32>
    %102 = arith.minimumf %101, %100 : vector<32x8xf32>
    %cst_38 = arith.constant 5.000000e-01 : f32
    %103 = vector.broadcast %cst_38 : f32 to vector<32x8xf32>
    %104 = arith.mulf %103, %81 : vector<32x8xf32>
    %105 = arith.addf %75, %104 : vector<32x8xf32>
    %cst_39 = arith.constant 0.000000e+00 : f32
    %cst_40 = arith.constant 6.300000e+01 : f32
    %106 = vector.broadcast %cst_39 : f32 to vector<32x8xf32>
    %107 = arith.maximumf %106, %105 : vector<32x8xf32>
    %108 = vector.broadcast %cst_40 : f32 to vector<32x8xf32>
    %109 = arith.minimumf %108, %107 : vector<32x8xf32>
    %cst_41 = arith.constant 0.000000e+00 : f32
    %110 = vector.broadcast %cst_41 : f32 to vector<32x88xf32>
    %111 = tpu.concatenate %24, %88, %95, %102, %109, %110 in 1 : vector<32x8xf32>, vector<32x8xf32>, vector<32x8xf32>, vector<32x8xf32>, vector<32x8xf32>, vector<32x88xf32> -> vector<32x128xf32>
    %c0_42 = arith.constant 0 : index
    %c0_43 = arith.constant 0 : index
    %112 = vector.load %arg7[%c0_42, %c0_43] : memref<32x128xf32, #tpu.memory_space<vmem>>, vector<32x128xf32>
    tpu.vector_store %arg7[%c0_42, %c0_43], %111 {strides = array<i32>} : memref<32x128xf32, #tpu.memory_space<vmem>>, vector<32x128xf32>,
    return
  }
  func.func @transform_0(%arg0: i32) -> (i32, i32) {
    %c0_i32 = arith.constant 0 : i32
    %c0_i32_0 = arith.constant 0 : i32
    %c0_i32_1 = arith.constant 0 : i32
    return %c0_i32, %c0_i32_0 : i32, i32
  }
  func.func @transform_1(%arg0: i32) -> (i32, i32) {
    %c0_i32 = arith.constant 0 : i32
    %c0_i32_0 = arith.constant 0 : i32
    %c0_i32_1 = arith.constant 0 : i32
    return %c0_i32, %c0_i32_0 : i32, i32
  }
  func.func @transform_2(%arg0: i32) -> (i32, i32) {
    %c0_i32 = arith.constant 0 : i32
    %c0_i32_0 = arith.constant 0 : i32
    %c0_i32_1 = arith.constant 0 : i32
    return %c0_i32, %c0_i32_0 : i32, i32
  }
  func.func @transform_3(%arg0: i32) -> (i32, i32) {
    %c0_i32 = arith.constant 0 : i32
    %c0_i32_0 = arith.constant 0 : i32
    %c0_i32_1 = arith.constant 0 : i32
    return %c0_i32, %c0_i32_0 : i32, i32
  }
  func.func @transform_4(%arg0: i32) -> (i32, i32) {
    %c0_i32 = arith.constant 0 : i32
    %c0_i32_0 = arith.constant 0 : i32
    %c0_i32_1 = arith.constant 0 : i32
    return %c0_i32, %c0_i32_0 : i32, i32
  }
  func.func @transform_5(%arg0: i32) -> (i32, i32) {
    %c0_i32 = arith.constant 0 : i32
    %c0_i32_0 = arith.constant 0 : i32
    %c0_i32_1 = arith.constant 0 : i32
    return %c0_i32, %c0_i32_0 : i32, i32
  }
  func.func @transform_6(%arg0: i32) -> (i32, i32) {
    %c0_i32 = arith.constant 0 : i32
    %c0_i32_0 = arith.constant 0 : i32
    %c0_i32_1 = arith.constant 0 : i32
    return %c0_i32, %c0_i32_0 : i32, i32
  }
}

</mosaic_0001>

<llo_original>
// kernel: detect_core.1
$region0: #{detect_core.1}
  #allocation0 [shape = 'u32[]', space=smem, size = 0x4, offset = 0x4, fixed_abs, tag = 'smem constant byte address 0x4 - core index']
  #allocation1 [shape = 'u32[144,128]{1,0:T(1,128)}', space=vmem, size = 0x12000, scoped, tag = 'internal scratch']
  %s0 = inlined_call_operand.vmem [shape: bf16[32,192], index: 0, kind: input, shape index: {}]
  %s1 = inlined_call_operand.vmem [shape: bf16[192,64], index: 1, kind: input, shape index: {}]
  %s2 = inlined_call_operand.hbm [shape: f32[1,64], index: 2, kind: input, shape index: {}]
  %s3 = inlined_call_operand.vmem [shape: bf16[64,40], index: 3, kind: input, shape index: {}]
  %s4 = inlined_call_operand.vmem [shape: f32[1,40], index: 4, kind: input, shape index: {}]
  %s5 = inlined_call_operand.vmem [shape: f32[32,4], index: 5, kind: input, shape index: {}]
  %s6 = inlined_call_operand.vmem [shape: f32[32,128], index: 6, kind: output, shape index: {}]
  %s7 = sld [smem:[#allocation0]]
  $region38: #{detect_core.1} parent=0
    _
  %s9 = ssub.s32 1, %s7
  %s10 = scalar_select 0, %s9, %s7
  $region1: #{detect_core.1} parent=0
    #allocation2 [shape = 'u8[512]{0}', space=vmem, size = 0x400, scoped, tag = 'input window, operand 2, single buffered']
    #allocation3 [shape = 's32[1]{0}', space=sflag, size = 0x4, scoped, tag = 'scoped memory for detect_core.1']
    %11 = vsyncpa [#allocation3], 0
    // Predicated region
    $region2: #{detect_core.1} parent=1 // pred_check
      _
    $region3: #{detect_core.1} parent=1 // pred_check_branch
      %13 = sbr.rel (0) target = $region5
    $region4: #{detect_core.1} parent=1 // pred_region
      _
    $region5: #{detect_core.1} parent=1 // pred_fallthru
      _
    // Predicated region
    $region6: #{detect_core.1} parent=1 // pred_check
      _
    $region7: #{detect_core.1} parent=1 // pred_check_branch
      %15 = sbr.rel (0) target = $region9
    $region8: #{detect_core.1} parent=1 // pred_region
      _
    $region9: #{detect_core.1} parent=1 // pred_fallthru
      _
    // Predicated region
    $region10: #{detect_core.1} parent=1 // pred_check
      _
    $region11: #{detect_core.1} parent=1 // pred_check_branch
      %17 = sbr.rel (0) target = $region13
    $region12: #{detect_core.1} parent=1 // pred_region
      %s19 = ssub.s32 16, 16
      %20 = vsyncadd [#allocation3], %s19
      %s22 = sshll.u32 [#allocation2], 4
      %s23 = int_to_ptr.vmem [resolvable:$true] %s22
      %25 = dma.hbm_to_vmem [thread:$0]  %s2, 16, %s23, [#allocation3]
    $region13: #{detect_core.1} parent=1 // pred_fallthru
      _
    // Predicated region
    $region14: #{detect_core.1} parent=1 // pred_check
      _
    $region15: #{detect_core.1} parent=1 // pred_check_branch
      %27 = sbr.rel (0) target = $region17
    $region16: #{detect_core.1} parent=1 // pred_region
      _
    $region17: #{detect_core.1} parent=1 // pred_fallthru
      _
    // Predicated region
    $region18: #{detect_core.1} parent=1 // pred_check
      _
    $region19: #{detect_core.1} parent=1 // pred_check_branch
      %29 = sbr.rel (0) target = $region21
    $region20: #{detect_core.1} parent=1 // pred_region
      _
    $region21: #{detect_core.1} parent=1 // pred_fallthru
      _
    // Predicated region
    $region22: #{detect_core.1} parent=1 // pred_check
      _
    $region23: #{detect_core.1} parent=1 // pred_check_branch
      %31 = sbr.rel (0) target = $region25
    $region24: #{detect_core.1} parent=1 // pred_region
      _
    $region25: #{detect_core.1} parent=1 // pred_fallthru
      _
    // Predicated region
    $region26: #{detect_core.1} parent=1 // pred_check
      _
    $region27: #{detect_core.1} parent=1 // pred_check_branch
      %33 = sbr.rel (0) target = $region29
    $region28: #{detect_core.1} parent=1 // pred_region
      %34 = dma.done [#allocation3], 16
    $region29: #{detect_core.1} parent=1 // pred_fallthru
      _
    %v36 = vld [vmem:[%s0] sm:$0xff]
    %v37 = vld [vmem:[%s0 + $0x8] sm:$0xff]
    %v38 = vld [vmem:[%s0 + $0x10] sm:$0xff]
    %v39 = vld [vmem:[%s0 + $0x18] sm:$0xff]
    %v40 = vld [vmem:[%s1] sm:$0xf]
    %v41 = vld [vmem:[%s1 + $0x4] sm:$0xf]
    %v42 = vld [vmem:[%s1 + $0x8] sm:$0xf]
    %v43 = vld [vmem:[%s1 + $0xc] sm:$0xf]
    %v44 = vld [vmem:[%s1 + $0x10] sm:$0xf]
    %v45 = vld [vmem:[%s1 + $0x14] sm:$0xf]
    %v46 = vld [vmem:[%s1 + $0x18] sm:$0xf]
    %v47 = vld [vmem:[%s1 + $0x1c] sm:$0xf]
    %v48 = vld [vmem:[%s1 + $0x20] sm:$0xf]
    %v49 = vld [vmem:[%s1 + $0x24] sm:$0xf]
    %v50 = vld [vmem:[%s1 + $0x28] sm:$0xf]
    %v51 = vld [vmem:[%s1 + $0x2c] sm:$0xf]
    %v52 = vld [vmem:[%s1 + $0x30] sm:$0xf]
    %v53 = vld [vmem:[%s1 + $0x34] sm:$0xf]
    %v54 = vld [vmem:[%s1 + $0x38] sm:$0xf]
    %v55 = vld [vmem:[%s1 + $0x3c] sm:$0xf]
    %v56 = vld [vmem:[%s1 + $0x40] sm:$0xf]
    %v57 = vld [vmem:[%s1 + $0x44] sm:$0xf]
    %v58 = vld [vmem:[%s1 + $0x48] sm:$0xf]
    %v59 = vld [vmem:[%s1 + $0x4c] sm:$0xf]
    %v60 = vld [vmem:[%s1 + $0x50] sm:$0xf]
    %v61 = vld [vmem:[%s1 + $0x54] sm:$0xf]
    %v62 = vld [vmem:[%s1 + $0x58] sm:$0xf]
    %v63 = vld [vmem:[%s1 + $0x5c] sm:$0xf]
    %v64 = vld [vmem:[#allocation2] sm:$0x1]
    %v66 = vlaneseq
    %v67 = vshrl.u32 %v66, 7
    %v68 = vsub.s32 0, %v67
    %v69 = vrot.slane %v64, %v68
    %v75 = vunpack.c.l.b16 %v36
    %v76 = vunpack.c.h.b16 %v36
    %v77 = vunpack.c.l.b16 %v37
    %v78 = vunpack.c.h.b16 %v37
    %v79 = vunpack.c.l.b16 %v38
    %v80 = vunpack.c.h.b16 %v38
    %v81 = vunpack.c.l.b16 %v39
    %v82 = vunpack.c.h.b16 %v39
    %v83 = vpack.c.b16 %v77, %v75
    %v84 = vpack.c.b16 %v78, %v76
    %v85 = vpack.c.b16 %v81, %v79
    %v86 = vpack.c.b16 %v82, %v80
    %v113 = vunpack.c.l.b16 %v40
    %v114 = vunpack.c.l.b16 %v41
    %v115 = vunpack.c.l.b16 %v42
    %v116 = vunpack.c.l.b16 %v43
    %v117 = vunpack.c.l.b16 %v44
    %v118 = vunpack.c.l.b16 %v45
    %v119 = vunpack.c.l.b16 %v46
    %v120 = vunpack.c.l.b16 %v47
    %v121 = vunpack.c.l.b16 %v48
    %v122 = vunpack.c.l.b16 %v49
    %v123 = vunpack.c.l.b16 %v50
    %v124 = vunpack.c.l.b16 %v51
    %v125 = vunpack.c.l.b16 %v52
    %v126 = vunpack.c.l.b16 %v53
    %v127 = vunpack.c.l.b16 %v54
    %v128 = vunpack.c.l.b16 %v55
    %v129 = vunpack.c.l.b16 %v56
    %v130 = vunpack.c.l.b16 %v57
    %v131 = vunpack.c.l.b16 %v58
    %v132 = vunpack.c.l.b16 %v59
    %v133 = vunpack.c.l.b16 %v60
    %v134 = vunpack.c.l.b16 %v61
    %v135 = vunpack.c.l.b16 %v62
    %v136 = vunpack.c.l.b16 %v63
    %v137 = vpack.c.b16 %v114, %v113
    %v138 = vpack.c.b16 %v116, %v115
    %v139 = vpack.c.b16 %v118, %v117
    %v140 = vpack.c.b16 %v120, %v119
    %v141 = vpack.c.b16 %v122, %v121
    %v142 = vpack.c.b16 %v124, %v123
    %v143 = vpack.c.b16 %v126, %v125
    %v144 = vpack.c.b16 %v128, %v127
    %v145 = vpack.c.b16 %v130, %v129
    %v146 = vpack.c.b16 %v132, %v131
    %v147 = vpack.c.b16 %v134, %v133
    %v148 = vpack.c.b16 %v136, %v135
    %vm161 = vcmask 523264
    %v163 = vsel %vm161, %v84, 0
    %v166 = vsel %vm161, %v86, 0
    %168 = vmatprep.subr.bf16.mxu0 0
    %169 = vmatpush1.bf16.msra.mxu0 %v137
    %170 = vmatprep.subr.bf16.mxu0 0
    %171 = vmatpush1.bf16.msra.mxu0 %v138
    %172 = vmatprep.subr.bf16.mxu0 0
    %173 = vmatpush1.bf16.msra.mxu0 %v139
    %174 = vmatprep.subr.bf16.mxu0 0
    %175 = vmatpush1.bf16.msra.mxu0 %v140
    %176 = vmatprep.subr.bf16.mxu0 0
    %177 = vmatpush1.bf16.msra.mxu0 %v141
    %178 = vmatprep.subr.bf16.mxu0 0
    %179 = vmatpush1.bf16.msra.mxu0 %v142
    %180 = vmatprep.subr.bf16.mxu0 0
    %181 = vmatpush1.bf16.msra.mxu0 %v143
    %182 = vmatprep.subr.bf16.mxu0 0
    %183 = vmatpush1.bf16.msra.mxu0 %v144
    %184 = vmatprep.subr.bf16.mxu0 0
    %185 = vmatpush1.bf16.msra.mxu0 %v145
    %186 = vmatprep.subr.bf16.mxu0 0
    %187 = vmatpush1.bf16.msra.mxu0 %v146
    %188 = vmatprep.subr.bf16.mxu0 0
    %189 = vmatpush1.bf16.msra.mxu0 %v147
    %190 = vmatprep.subr.bf16.mxu0 0
    %191 = vmatpush1.bf16.msra.mxu0 %v148
    %192 = vmatprep.subr.bf16.mxu0 0
    %193 = vmatpush1.bf16.msra.mxu0 0
    %194 = vmatprep.subr.bf16.mxu0 0
    %195 = vmatpush1.bf16.msra.mxu0 0
    %196 = vmatprep.subr.bf16.mxu0 0
    %197 = vmatpush1.bf16.msra.mxu0 0
    %198 = vmatprep.subr.bf16.mxu0 0
    %199 = vmatpush1.bf16.msra.mxu0 0
    %200 = vmatprep.mubr.bf16.mxu0 %v163
    %201 = vmatmul.mubr.bf16.gmra.mrb[0].mxu0 %v83
    %v202 = vpop.f32.mrb[0].mxu0
    %v203 = vadd.f32 %v69, %v202
    %v204 = vpop.f32.mrb[0].mxu0
    %v205 = vpop.f32.mrb[0].mxu0
    %v206 = vadd.f32 %v69, %v205
    %v207 = vpop.f32.mrb[0].mxu0
    %208 = vmatprep.mubr.bf16.mxu0 %v166
    %209 = vmatmul.mubr.bf16.gmra.mrb[0].mxu0 %v85
    %v210 = vpop.f32.mrb[0].mxu0
    %v211 = vadd.f32 %v69, %v210
    %v212 = vpop.f32.mrb[0].mxu0
    %v213 = vpop.f32.mrb[0].mxu0
    %v214 = vadd.f32 %v69, %v213
    %v215 = vpop.f32.mrb[0].mxu0
    %216 = vdwg.mxu0
    %v217 = vmax.f32 %v203, 0.0
    %v218 = vmax.f32 %v206, 0.0
    %v219 = vmax.f32 %v211, 0.0
    %v220 = vmax.f32 %v214, 0.0
    %v221 = vpack.c.bf16 %v218, %v217
    %v222 = vpack.c.bf16 %v220, %v219
    %v223 = vld [vmem:[%s3] sm:$0xf]
    %v224 = vld [vmem:[%s3 + $0x4] sm:$0xf]
    %v225 = vld [vmem:[%s3 + $0x8] sm:$0xf]
    %v226 = vld [vmem:[%s3 + $0xc] sm:$0xf]
    %v227 = vld [vmem:[%s3 + $0x10] sm:$0xf]
    %v228 = vld [vmem:[%s3 + $0x14] sm:$0xf]
    %v229 = vld [vmem:[%s3 + $0x18] sm:$0xf]
    %v230 = vld [vmem:[%s3 + $0x1c] sm:$0xf]
    %v231 = vld [vmem:[%s4] sm:$0x1]
    %v233 = vlaneseq
    %v234 = vshrl.u32 %v233, 7
    %v235 = vsub.s32 0, %v234
    %v236 = vrot.slane %v231, %v235
    %v246 = vunpack.c.l.b16 %v223
    %v247 = vunpack.c.l.b16 %v224
    %v248 = vunpack.c.l.b16 %v225
    %v249 = vunpack.c.l.b16 %v226
    %v250 = vunpack.c.l.b16 %v227
    %v251 = vunpack.c.l.b16 %v228
    %v252 = vunpack.c.l.b16 %v229
    %v253 = vunpack.c.l.b16 %v230
    %v254 = vpack.c.b16 %v247, %v246
    %v255 = vpack.c.b16 %v249, %v248
    %v256 = vpack.c.b16 %v251, %v250
    %v257 = vpack.c.b16 %v253, %v252
    %v263 = vsel %vm161, %v221, 0
    %v266 = vsel %vm161, %v222, 0
    %268 = vmatprep.subr.bf16.mxu0 0
    %269 = vmatpush1.bf16.msra.mxu0 %v254
    %270 = vmatprep.subr.bf16.mxu0 0
    %271 = vmatpush1.bf16.msra.mxu0 %v255
    %272 = vmatprep.subr.bf16.mxu0 0
    %273 = vmatpush1.bf16.msra.mxu0 %v256
    %274 = vmatprep.subr.bf16.mxu0 0
    %275 = vmatpush1.bf16.msra.mxu0 %v257
    %276 = vmatprep.subr.bf16.mxu0 0
    %277 = vmatpush1.bf16.msra.mxu0 0
    %278 = vmatprep.subr.bf16.mxu0 0
    %279 = vmatpush1.bf16.msra.mxu0 0
    %280 = vmatprep.subr.bf16.mxu0 0
    %281 = vmatpush1.bf16.msra.mxu0 0
    %282 = vmatprep.subr.bf16.mxu0 0
    %283 = vmatpush1.bf16.msra.mxu0 0
    %284 = vmatprep.subr.bf16.mxu0 0
    %285 = vmatpush1.bf16.msra.mxu0 0
    %286 = vmatprep.subr.bf16.mxu0 0
    %287 = vmatpush1.bf16.msra.mxu0 0
    %288 = vmatprep.subr.bf16.mxu0 0
    %289 = vmatpush1.bf16.msra.mxu0 0
    %290 = vmatprep.subr.bf16.mxu0 0
    %291 = vmatpush1.bf16.msra.mxu0 0
    %292 = vmatprep.subr.bf16.mxu0 0
    %293 = vmatpush1.bf16.msra.mxu0 0
    %294 = vmatprep.subr.bf16.mxu0 0
    %295 = vmatpush1.bf16.msra.mxu0 0
    %296 = vmatprep.subr.bf16.mxu0 0
    %297 = vmatpush1.bf16.msra.mxu0 0
    %298 = vmatprep.subr.bf16.mxu0 0
    %299 = vmatpush1.bf16.msra.mxu0 0
    %300 = vmatprep.mubr.bf16.mxu0 0
    %301 = vmatmul.mubr.bf16.gmra.mrb[0].mxu0 %v263
    %v302 = vpop.f32.mrb[0].mxu0
    %v303 = vadd.f32 %v236, %v302
    %v304 = vpop.f32.mrb[0].mxu0
    %v305 = vpop.f32.mrb[0].mxu0
    %v306 = vadd.f32 %v236, %v305
    %v307 = vpop.f32.mrb[0].mxu0
    %308 = vmatprep.mubr.bf16.mxu0 0
    %309 = vmatmul.mubr.bf16.gmra.mrb[0].mxu0 %v266
    %v310 = vpop.f32.mrb[0].mxu0
    %v311 = vadd.f32 %v236, %v310
    %v312 = vpop.f32.mrb[0].mxu0
    %v313 = vpop.f32.mrb[0].mxu0
    %v314 = vadd.f32 %v236, %v313
    %v315 = vpop.f32.mrb[0].mxu0
    %316 = vdwg.mxu0
    %vm317 = vcmask 64512
    %v318 = vsel %vm317, %v303, -inf
    %319 = vmax.xlane.f32.xlu0 %v318
    %v320 = vpop.xlane.xlu0 %319
    %v321 = vsel %vm317, %v306, -inf
    %322 = vmax.xlane.f32.xlu0 %v321
    %v323 = vpop.xlane.xlu0 %322
    %v324 = vsel %vm317, %v311, -inf
    %325 = vmax.xlane.f32.xlu0 %v324
    %v326 = vpop.xlane.xlu0 %325
    %v327 = vsel %vm317, %v314, -inf
    %328 = vmax.xlane.f32.xlu0 %v327
    %v329 = vpop.xlane.xlu0 %328
    %v330 = vsub.f32 %v303, %v320
    %v331 = vsub.f32 %v306, %v323
    %v332 = vsub.f32 %v311, %v326
    %v333 = vsub.f32 %v314, %v329
    %v334 = vmul.f32 %v330, 1.442695
    %v335 = vpow.pop %v334
    %v336 = vmul.f32 %v331, 1.442695
    %v337 = vpow.pop %v336
    %v338 = vmul.f32 %v332, 1.442695
    %v339 = vpow.pop %v338
    %v340 = vmul.f32 %v333, 1.442695
    %v341 = vpow.pop %v340
    %v342 = vsel %vm317, %v335, 0.0
    %343 = vadd.xlane.f32.xlu0 %v342
    %v344 = vpop.xlane.xlu0 %343
    %v345 = vsel %vm317, %v337, 0.0
    %346 = vadd.xlane.f32.xlu0 %v345
    %v347 = vpop.xlane.xlu0 %346
    %v348 = vsel %vm317, %v339, 0.0
    %349 = vadd.xlane.f32.xlu0 %v348
    %v350 = vpop.xlane.xlu0 %349
    %v351 = vsel %vm317, %v341, 0.0
    %352 = vadd.xlane.f32.xlu0 %v351
    %v353 = vpop.xlane.xlu0 %352
    %v354 = vrcp.pop %v344
    %v355 = vrcp.pop %v347
    %v356 = vrcp.pop %v350
    %v357 = vrcp.pop %v353
    %v358 = vmul.f32 %v335, %v354
    %v359 = vmul.f32 %v337, %v355
    %v360 = vmul.f32 %v339, %v356
    %v361 = vmul.f32 %v341, %v357
    %v362 = vld [vmem:[%s5] sm:$0xff]
    %v363 = vld [vmem:[%s5 + $0x8] sm:$0xff]
    %v364 = vld [vmem:[%s5 + $0x10] sm:$0xff]
    %v365 = vld [vmem:[%s5 + $0x18] sm:$0xff]
    %370 = vrot.lane.b32.xlu0 %v362, 2
    %v371 = vpop.permute.xlu0 %370
    %372 = vrot.lane.b32.xlu0 %v363, 2
    %v373 = vpop.permute.xlu0 %372
    %374 = vrot.lane.b32.xlu0 %v364, 2
    %v375 = vpop.permute.xlu0 %374
    %376 = vrot.lane.b32.xlu0 %v365, 2
    %v377 = vpop.permute.xlu0 %376
    %v382 = vsub.f32 %v362, %v371
    %v383 = vsub.f32 %v363, %v373
    %v384 = vsub.f32 %v364, %v375
    %v385 = vsub.f32 %v365, %v377
    %v386 = vadd.f32 %v382, 1.0
    %v387 = vadd.f32 %v383, 1.0
    %v388 = vadd.f32 %v384, 1.0
    %v389 = vadd.f32 %v385, 1.0
    %v390 = vmul.f32 %v386, 0.5
    %v391 = vmul.f32 %v387, 0.5
    %v392 = vmul.f32 %v388, 0.5
    %v393 = vmul.f32 %v389, 0.5
    %398 = vrot.lane.b32.xlu0 %v390, 126
    %v399 = vpop.permute.xlu0 %398
    %400 = vrot.lane.b32.xlu0 %v391, 126
    %v401 = vpop.permute.xlu0 %400
    %402 = vrot.lane.b32.xlu0 %v392, 126
    %v403 = vpop.permute.xlu0 %402
    %404 = vrot.lane.b32.xlu0 %v393, 126
    %v405 = vpop.permute.xlu0 %404
    %v410 = vadd.f32 %v362, %v399
    %v411 = vadd.f32 %v363, %v401
    %v412 = vadd.f32 %v364, %v403
    %v413 = vadd.f32 %v365, %v405
    %v414 = vmul.f32 %v303, 0.1
    %v415 = vmul.f32 %v306, 0.1
    %v416 = vmul.f32 %v311, 0.1
    %v417 = vmul.f32 %v314, 0.1
    %v418 = vadd.f32 %v414, 0.0
    %v419 = vadd.f32 %v415, 0.0
    %v420 = vadd.f32 %v416, 0.0
    %v421 = vadd.f32 %v417, 0.0
    %v422 = vmul.f32 %v303, 0.2
    %v423 = vmul.f32 %v306, 0.2
    %v424 = vmul.f32 %v311, 0.2
    %v425 = vmul.f32 %v314, 0.2
    %v426 = vadd.f32 %v422, 0.0
    %v427 = vadd.f32 %v423, 0.0
    %v428 = vadd.f32 %v424, 0.0
    %v429 = vadd.f32 %v425, 0.0
    %v430 = vmin.f32 %v426, 4.1351666
    %v431 = vmin.f32 %v427, 4.1351666
    %v432 = vmin.f32 %v428, 4.1351666
    %v433 = vmin.f32 %v429, 4.1351666
    %435 = vset.pattern.permute.xlu0 2
    %436 = vperm.xlu0 %435, %v386
    %v437 = vpop.permute.xlu0 %436
    %440 = vset.pattern.permute.xlu0 2
    %441 = vperm.xlu0 %440, %v387
    %v442 = vpop.permute.xlu0 %441
    %445 = vset.pattern.permute.xlu0 2
    %446 = vperm.xlu0 %445, %v388
    %v447 = vpop.permute.xlu0 %446
    %450 = vset.pattern.permute.xlu0 2
    %451 = vperm.xlu0 %450, %v389
    %v452 = vpop.permute.xlu0 %451
    %v454 = vmul.f32 %v418, %v437
    %v455 = vmul.f32 %v419, %v442
    %v456 = vmul.f32 %v420, %v447
    %v457 = vmul.f32 %v421, %v452
    %459 = vset.pattern.permute.xlu0 0
    %460 = vperm.xlu0 %459, %v410
    %v461 = vpop.permute.xlu0 %460
    %464 = vset.pattern.permute.xlu0 0
    %465 = vperm.xlu0 %464, %v411
    %v466 = vpop.permute.xlu0 %465
    %469 = vset.pattern.permute.xlu0 0
    %470 = vperm.xlu0 %469, %v412
    %v471 = vpop.permute.xlu0 %470
    %474 = vset.pattern.permute.xlu0 0
    %475 = vperm.xlu0 %474, %v413
    %v476 = vpop.permute.xlu0 %475
    %v478 = vadd.f32 %v454, %v461
    %v479 = vadd.f32 %v455, %v466
    %v480 = vadd.f32 %v456, %v471
    %v481 = vadd.f32 %v457, %v476
    %482 = vset.pattern.permute.xlu0 3
    %483 = vperm.xlu0 %482, %v386
    %v484 = vpop.permute.xlu0 %483
    %486 = vset.pattern.permute.xlu0 3
    %487 = vperm.xlu0 %486, %v387
    %v488 = vpop.permute.xlu0 %487
    %490 = vset.pattern.permute.xlu0 3
    %491 = vperm.xlu0 %490, %v388
    %v492 = vpop.permute.xlu0 %491
    %494 = vset.pattern.permute.xlu0 3
    %495 = vperm.xlu0 %494, %v389
    %v496 = vpop.permute.xlu0 %495
    %v498 = vmul.f32 %v418, %v484
    %v499 = vmul.f32 %v419, %v488
    %v500 = vmul.f32 %v420, %v492
    %v501 = vmul.f32 %v421, %v496
    %502 = vset.pattern.permute.xlu0 1
    %503 = vperm.xlu0 %502, %v410
    %v504 = vpop.permute.xlu0 %503
    %506 = vset.pattern.permute.xlu0 1
    %507 = vperm.xlu0 %506, %v411
    %v508 = vpop.permute.xlu0 %507
    %510 = vset.pattern.permute.xlu0 1
    %511 = vperm.xlu0 %510, %v412
    %v512 = vpop.permute.xlu0 %511
    %514 = vset.pattern.permute.xlu0 1
    %515 = vperm.xlu0 %514, %v413
    %v516 = vpop.permute.xlu0 %515
    %v518 = vadd.f32 %v498, %v504
    %v519 = vadd.f32 %v499, %v508
    %v520 = vadd.f32 %v500, %v512
    %v521 = vadd.f32 %v501, %v516
    %v522 = vmul.f32 %v430, 1.442695
    %v523 = vpow.pop %v522
    %v524 = vmul.f32 %v431, 1.442695
    %v525 = vpow.pop %v524
    %v526 = vmul.f32 %v432, 1.442695
    %v527 = vpow.pop %v526
    %v528 = vmul.f32 %v433, 1.442695
    %v529 = vpow.pop %v528
    %v530 = vmul.f32 %v523, %v437
    %v531 = vmul.f32 %v525, %v442
    %v532 = vmul.f32 %v527, %v447
    %v533 = vmul.f32 %v529, %v452
    %v534 = vmul.f32 %v523, %v484
    %v535 = vmul.f32 %v525, %v488
    %v536 = vmul.f32 %v527, %v492
    %v537 = vmul.f32 %v529, %v496
    %v538 = vmul.f32 %v530, 0.5
    %v539 = vmul.f32 %v531, 0.5
    %v540 = vmul.f32 %v532, 0.5
    %v541 = vmul.f32 %v533, 0.5
    %546 = vrot.lane.b32.xlu0 %v538, 112
    %v547 = vpop.permute.xlu0 %546
    %548 = vrot.lane.b32.xlu0 %v539, 112
    %v549 = vpop.permute.xlu0 %548
    %550 = vrot.lane.b32.xlu0 %v540, 112
    %v551 = vpop.permute.xlu0 %550
    %552 = vrot.lane.b32.xlu0 %v541, 112
    %v553 = vpop.permute.xlu0 %552
    %v558 = vsub.f32 %v478, %v547
    %v559 = vsub.f32 %v479, %v549
    %v560 = vsub.f32 %v480, %v551
    %v561 = vsub.f32 %v481, %v553
    %v562 = vmax.f32 %v558, 0.0
    %v563 = vmax.f32 %v559, 0.0
    %v564 = vmax.f32 %v560, 0.0
    %v565 = vmax.f32 %v561, 0.0
    %v566 = vmin.f32 %v562, 63.0
    %v567 = vmin.f32 %v563, 63.0
    %v568 = vmin.f32 %v564, 63.0
    %v569 = vmin.f32 %v565, 63.0
    %v570 = vmul.f32 %v534, 0.5
    %v571 = vmul.f32 %v535, 0.5
    %v572 = vmul.f32 %v536, 0.5
    %v573 = vmul.f32 %v537, 0.5
    %578 = vrot.lane.b32.xlu0 %v570, 112
    %v579 = vpop.permute.xlu0 %578
    %580 = vrot.lane.b32.xlu0 %v571, 112
    %v581 = vpop.permute.xlu0 %580
    %582 = vrot.lane.b32.xlu0 %v572, 112
    %v583 = vpop.permute.xlu0 %582
    %584 = vrot.lane.b32.xlu0 %v573, 112
    %v585 = vpop.permute.xlu0 %584
    %v590 = vsub.f32 %v518, %v579
    %v591 = vsub.f32 %v519, %v581
    %v592 = vsub.f32 %v520, %v583
    %v593 = vsub.f32 %v521, %v585
    %v594 = vmax.f32 %v590, 0.0
    %v595 = vmax.f32 %v591, 0.0
    %v596 = vmax.f32 %v592, 0.0
    %v597 = vmax.f32 %v593, 0.0
    %v598 = vmin.f32 %v594, 63.0
    %v599 = vmin.f32 %v595, 63.0
    %v600 = vmin.f32 %v596, 63.0
    %v601 = vmin.f32 %v597, 63.0
    %v602 = vadd.f32 %v478, %v547
    %v603 = vadd.f32 %v479, %v549
    %v604 = vadd.f32 %v480, %v551
    %v605 = vadd.f32 %v481, %v553
    %v606 = vmax.f32 %v602, 0.0
    %v607 = vmax.f32 %v603, 0.0
    %v608 = vmax.f32 %v604, 0.0
    %v609 = vmax.f32 %v605, 0.0
    %v610 = vmin.f32 %v606, 63.0
    %v611 = vmin.f32 %v607, 63.0
    %v612 = vmin.f32 %v608, 63.0
    %v613 = vmin.f32 %v609, 63.0
    %v614 = vadd.f32 %v518, %v579
    %v615 = vadd.f32 %v519, %v581
    %v616 = vadd.f32 %v520, %v583
    %v617 = vadd.f32 %v521, %v585
    %v618 = vmax.f32 %v614, 0.0
    %v619 = vmax.f32 %v615, 0.0
    %v620 = vmax.f32 %v616, 0.0
    %v621 = vmax.f32 %v617, 0.0
    %v622 = vmin.f32 %v618, 63.0
    %v623 = vmin.f32 %v619, 63.0
    %v624 = vmin.f32 %v620, 63.0
    %v625 = vmin.f32 %v621, 63.0
    %630 = vrot.lane.b32.xlu0 %v610, 16
    %v631 = vpop.permute.xlu0 %630
    %632 = vrot.lane.b32.xlu0 %v611, 16
    %v633 = vpop.permute.xlu0 %632
    %634 = vrot.lane.b32.xlu0 %v612, 16
    %v635 = vpop.permute.xlu0 %634
    %636 = vrot.lane.b32.xlu0 %v613, 16
    %v637 = vpop.permute.xlu0 %636
    %646 = vrot.lane.b32.xlu0 %v622, 16
    %v647 = vpop.permute.xlu0 %646
    %648 = vrot.lane.b32.xlu0 %v623, 16
    %v649 = vpop.permute.xlu0 %648
    %650 = vrot.lane.b32.xlu0 %v624, 16
    %v651 = vpop.permute.xlu0 %650
    %652 = vrot.lane.b32.xlu0 %v625, 16
    %v653 = vpop.permute.xlu0 %652
    %v658 = vsel %vm317, %v358, %v566
    %v659 = vsel %vm317, %v359, %v567
    %v660 = vsel %vm317, %v360, %v568
    %v661 = vsel %vm317, %v361, %v569
    %vm662 = vcmask 130048
    %v663 = vsel %vm662, %v658, %v598
    %v664 = vsel %vm662, %v659, %v599
    %v665 = vsel %vm662, %v660, %v600
    %v666 = vsel %vm662, %v661, %v601
    %vm667 = vcmask 195584
    %v668 = vsel %vm667, %v663, %v631
    %v669 = vsel %vm667, %v664, %v633
    %v670 = vsel %vm667, %v665, %v635
    %v671 = vsel %vm667, %v666, %v637
    %vm672 = vcmask 261120
    %v673 = vsel %vm672, %v668, %v647
    %v674 = vsel %vm672, %v669, %v649
    %v675 = vsel %vm672, %v670, %v651
    %v676 = vsel %vm672, %v671, %v653
    %vm677 = vcmask 326656
    %v678 = vsel %vm677, %v673, 0.0
    %v679 = vsel %vm677, %v674, 0.0
    %v680 = vsel %vm677, %v675, 0.0
    %v681 = vsel %vm677, %v676, 0.0
    %682 = vst [vmem:[%s6] sm:$0xff] %v678
    %683 = vst [vmem:[%s6 + $0x8] sm:$0xff] %v679
    %684 = vst [vmem:[%s6 + $0x10] sm:$0xff] %v680
    %685 = vst [vmem:[%s6 + $0x18] sm:$0xff] %v681
    // Predicated region
    $region30: #{detect_core.1} parent=1 // pred_check
      _
    $region31: #{detect_core.1} parent=1 // pred_check_branch
      %687 = sbr.rel (0) target = $region33
    $region32: #{detect_core.1} parent=1 // pred_region
      _
    $region33: #{detect_core.1} parent=1 // pred_fallthru
      _
    // Predicated region
    $region34: #{detect_core.1} parent=1 // pred_check
      _
    $region35: #{detect_core.1} parent=1 // pred_check_branch
      %689 = sbr.rel (0) target = $region37
    $region36: #{detect_core.1} parent=1 // pred_region
      _
    $region37: #{detect_core.1} parent=1 // pred_fallthru
      _
    %690 = vsyncpa [#allocation3], 1

</llo_original>
